<compile_context>
chip_gen: v7x
topology: tpu7x:2x2x1
jax: 0.10.0
libtpu: 0.0.40
codegen_flags: <defaults>
</compile_context>

<pallas_src>
import jax
import jax.numpy as jnp
from jax.experimental import pallas as pl
from jax.experimental.pallas import tpu as pltpu


def _round_up(x, m):
    return ((x + m - 1) // m) * m


def _vmem_capacity_bytes():
    try:
        return int(pltpu.get_tpu_info().vmem_capacity_bytes)
    except Exception:
        return 64 << 20  # conservative fallback = v7x per-TC VMEM


def _choose_token_tile(n, e, itemsize, out_budget_bytes, max_tile=1024):
    """Largest multiple-of-8 token tile whose double-buffered output tile fits
    `out_budget_bytes`; prefer a tile that divides the 8-padded token count so
    the padded-output slice in the wrapper becomes a no-op."""
    n8 = _round_up(max(int(n), 1), 8)
    cap = max(8, (out_budget_bytes // (2 * e * itemsize)) // 8 * 8)
    tn = int(min(max_tile, cap, n8))
    tn = max(8, (tn // 8) * 8)
    if n8 % tn != 0:
        best = None
        for cand in range(tn, 7, -8):
            if n8 % cand == 0:
                best = cand
                break
        # Only take the divisor if it doesn't shrink the tile too much (tiny
        # tiles cost more per-step overhead than one padded-output slice).
        if best is not None and best >= max(64, tn // 2):
            tn = best
    return tn


# --------------------------------------------------------------------------
# Path A: table resident in VMEM, gather via one-hot matmul on the MXU.
# --------------------------------------------------------------------------
def _onehot_gather_kernel(ids_ref, table_ref, out_ref):
    # ids_ref:   (TN, 1) int32 token ids (VMEM tile)
    # table_ref: (V, E)  embedding table, resident in VMEM (full-array block)
    # out_ref:   (TN, E) output tile
    tn = out_ref.shape[0]
    v = table_ref.shape[0]
    ids = ids_ref[...]                                            # (TN, 1)
    cols = jax.lax.broadcasted_iota(jnp.int32, (tn, v), 1)        # (TN, V)
    onehot = (cols == ids).astype(table_ref.dtype)                # one 1 per row
    out_ref[...] = jnp.dot(
        onehot, table_ref[...], preferred_element_type=jnp.float32
    ).astype(out_ref.dtype)


def _govec_small_table(ids, table, vmem_cap, max_token_tile):
    n = ids.shape[0]
    V, E = table.shape
    it = jnp.dtype(table.dtype).itemsize
    tn = _choose_token_tile(n, E, it, out_budget_bytes=vmem_cap // 8,
                            max_tile=max_token_tile)
    n_pad = _round_up(n, tn)
    ids_p = ids if n_pad == n else jnp.zeros((n_pad,), jnp.int32).at[:n].set(ids)
    ids2d = ids_p.reshape(n_pad, 1)

    # Generous VMEM accounting: resident table, double-buffered ids (lane-
    # padded to 128) and output tiles, one-hot + f32 matmul temporaries.
    need = (V * E * it + 2 * tn * E * it + 2 * tn * 128 * 4
            + tn * V * 4 + tn * E * 4)
    vmem_limit = int(min(max(2 * need, 32 << 20), vmem_cap - (8 << 20)))

    grid = (n_pad // tn,)
    return pl.pallas_call(
        _onehot_gather_kernel,
        out_shape=jax.ShapeDtypeStruct((n_pad, E), table.dtype),
        grid_spec=pltpu.PrefetchScalarGridSpec(
            num_scalar_prefetch=0,
            grid=grid,
            in_specs=[
                pl.BlockSpec((tn, 1), lambda i: (i, 0)),   # token-id tile
                pl.BlockSpec((V, E), lambda i: (0, 0)),    # table stays resident
            ],
            out_specs=pl.BlockSpec((tn, E), lambda i: (i, 0)),
        ),
        compiler_params=pltpu.CompilerParams(
            dimension_semantics=("parallel",),
            vmem_limit_bytes=vmem_limit,
        ),
    )(ids2d, table)


# --------------------------------------------------------------------------
# Path B: large tables — true HBM row gather with DMA per token row.
# --------------------------------------------------------------------------
def _hbm_row_gather_kernel(ids_ref, table_hbm, out_ref, copy_sem):
    # ids_ref:   (N_pad,) int32 ids in SMEM (scalar prefetch)
    # table_hbm: (V, E)  embedding table, left in HBM (memory_space=pl.ANY)
    # out_ref:   (TN, E) pipelined VMEM output tile
    # copy_sem:  DMA semaphore shared by the TN row copies
    tn = out_ref.shape[0]
    base = pl.multiple_of(pl.program_id(0) * tn, tn)

    # Issue one row DMA per token; unrolled so the LLO scheduler can co-issue
    # the SMEM id load with the descriptor push (vector-misc slot).
    def issue(j, carry):
        row = ids_ref[base + j]
        pltpu.make_async_copy(table_hbm.at[row], out_ref.at[j], copy_sem).start()
        return carry

    jax.lax.fori_loop(0, tn, issue, 0, unroll=8)

    # Single aggregated wait: the DMA semaphore counts bytes, so waiting on a
    # (TN, E)-sized descriptor retires all TN row copies at once instead of
    # TN serialized scalar-core waits.
    pltpu.make_async_copy(table_hbm.at[pl.ds(0, tn)], out_ref, copy_sem).wait()
    # Pin ordering: the output block is defined purely by DMA writes.
    pltpu.touch(out_ref)
    # TODO(synk): cross-tile overlap (prefetch tile i+1's row DMAs into a
    # 2-slot VMEM scratch while tile i drains) would hide gather latency when
    # latency- rather than bandwidth-bound; left out to keep this path simple.


def _govec_hbm_gather(ids, table, vmem_cap, max_token_tile):
    n = ids.shape[0]
    V, E = table.shape
    it = jnp.dtype(table.dtype).itemsize
    tn = _choose_token_tile(n, E, it, out_budget_bytes=vmem_cap // 4,
                            max_tile=max_token_tile)
    # Keep the aggregated-wait descriptor (a (tn, E) table slice) in-bounds;
    # only matters for pathologically small vocabularies with huge E.
    if V >= 8:
        tn = min(tn, (V // 8) * 8)
    n_pad = _round_up(n, tn)
    ids_p = ids if n_pad == n else jnp.zeros((n_pad,), jnp.int32).at[:n].set(ids)

    need = 2 * tn * E * it          # double-buffered output tile
    vmem_limit = int(min(max(2 * need, 32 << 20), vmem_cap - (8 << 20)))

    grid = (n_pad // tn,)
    return pl.pallas_call(
        _hbm_row_gather_kernel,
        out_shape=jax.ShapeDtypeStruct((n_pad, E), table.dtype),
        grid_spec=pltpu.PrefetchScalarGridSpec(
            num_scalar_prefetch=1,                          # ids -> SMEM
            grid=grid,
            in_specs=[pl.BlockSpec(memory_space=pl.ANY)],   # table stays in HBM
            out_specs=pl.BlockSpec((tn, E), lambda i, ids: (i, 0)),
            scratch_shapes=[pltpu.SemaphoreType.DMA],
        ),
        compiler_params=pltpu.CompilerParams(
            dimension_semantics=("parallel",),  # v7x: both TCs split token tiles
            vmem_limit_bytes=vmem_limit,
        ),
    )(ids_p, table)


# --------------------------------------------------------------------------
# Wrapper: GoVec.forward equivalent (embedding lookup).
# --------------------------------------------------------------------------
def govec_forward(go, emb_weights, *, max_token_tile=1024):
    """go: integer ids of arbitrary shape; emb_weights: (V, E) table.
    Returns go.shape + (E,) embeddings in emb_weights.dtype."""
    V, E = emb_weights.shape
    itemsize = jnp.dtype(emb_weights.dtype).itemsize
    lead_shape = go.shape

    # TODO(synk): PyTorch nn.Embedding raises on out-of-range ids; clamped here.
    ids = jnp.clip(go.reshape(-1).astype(jnp.int32), 0, V - 1)
    n = ids.shape[0]

    vmem_cap = _vmem_capacity_bytes()
    table_bytes = V * E * itemsize
    table_budget = vmem_cap // 8     # table-resident fast path (8 MiB on v7x)
    onehot_max_v = 2048              # keep the (TN, V) one-hot / MXU work cheap

    # TODO(synk): optional bf16 table + id dedup for Zipfian streams would
    # further cut HBM traffic on the gather path; kept in native dtype here.
    if table_bytes <= table_budget and V <= onehot_max_v:
        out = _govec_small_table(ids, emb_weights, vmem_cap, max_token_tile)
    else:
        out = _govec_hbm_gather(ids, emb_weights, vmem_cap, max_token_tile)

    if out.shape[0] != n:            # no-op when TN divides the token count
        out = out[:n]
    return out.reshape(lead_shape + (E,))


def govec_reference(go, emb_weights):
    return jnp.take(emb_weights, go, axis=0)


if __name__ == "__main__":
    key = jax.random.PRNGKey(0)
    k_w, k_ids = jax.random.split(key)

    vocabulary_size = 64
    embedding_size = 32
    batch, seq = 2, 8

    # Deterministic synthetic embedding weights (stand-in for emb_weights).
    emb_weights = jax.random.normal(
        k_w, (vocabulary_size, embedding_size), dtype=jnp.float32
    )
    # Token ids ("go" input), shape (batch, seq).
    go = jax.random.randint(
        k_ids, (batch, seq), minval=0, maxval=vocabulary_size, dtype=jnp.int32
    )

    out = jax.block_until_ready(govec_forward(go, emb_weights))
    ref = govec_reference(go, emb_weights)

    assert out.shape == (batch, seq, embedding_size), out.shape
    assert out.dtype == emb_weights.dtype, out.dtype
    assert jnp.allclose(out, ref), "mismatch vs reference"

    print("KERNEL_OK")
</pallas_src>

<mosaic_0001>
module attributes {stable_mosaic.version = 11 : i64} {
  func.func @_onehot_gather_kernel(%arg0: i32, %arg1: memref<16x1xi32, #tpu.memory_space<vmem>>, %arg2: memref<64x32xf32, #tpu.memory_space<vmem>>, %arg3: memref<16x32xf32, #tpu.memory_space<vmem>>) attributes {dimension_semantics = [#tpu.dimension_semantics<parallel>], iteration_bounds = array<i64: 1>, scalar_prefetch = 0 : i64, scratch_operands = 0 : i64, tpu.core_type = #tpu.core_type<tc>, window_params = [{transform_indices = @transform_0, window_bounds = array<i64: 16, 1>}, {pipeline_mode = #tpu.pipeline_mode<synchronous>, transform_indices = @transform_1, window_bounds = array<i64: 64, 32>}, {transform_indices = @transform_2, window_bounds = array<i64: 16, 32>}]} {
    %c0 = arith.constant 0 : index
    %c0_0 = arith.constant 0 : index
    %0 = vector.load %arg1[%c0, %c0_0] : memref<16x1xi32, #tpu.memory_space<vmem>>, vector<16x1xi32>
    %1 = tpu.iota {dimensions = array<i32: 1>} : vector<16x64xi32>
    %2 = vector.broadcast %0 : vector<16x1xi32> to vector<16x64xi32>
    %3 = arith.cmpi eq, %1, %2 : vector<16x64xi32>
    %4 = arith.extui %3 : vector<16x64xi1> to vector<16x64xi32>
    %5 = arith.sitofp %4 : vector<16x64xi32> to vector<16x64xf32>
    %c0_1 = arith.constant 0 : index
    %c0_2 = arith.constant 0 : index
    %6 = vector.load %arg2[%c0_1, %c0_2] : memref<64x32xf32, #tpu.memory_space<vmem>>, vector<64x32xf32>
    %cst = arith.constant dense<0.000000e+00> : vector<16x32xf32>
    %7 = tpu.matmul %5, %6, %cst {dimension_numbers = #tpu.dot_dimension_numbers<[1], [0], [0], [1], [0, 0, 1, 1], [], []>} : vector<16x64xf32>, vector<64x32xf32>, vector<16x32xf32> -> vector<16x32xf32>
    %c0_3 = arith.constant 0 : index
    %c0_4 = arith.constant 0 : index
    %8 = vector.load %arg3[%c0_3, %c0_4] : memref<16x32xf32, #tpu.memory_space<vmem>>, vector<16x32xf32>
    tpu.vector_store %arg3[%c0_3, %c0_4], %7 {strides = array<i32>} : memref<16x32xf32, #tpu.memory_space<vmem>>, vector<16x32xf32>,
    return
  }
  func.func @transform_0(%arg0: i32) -> (i32, i32) {
    %c0_i32 = arith.constant 0 : i32
    %c0_i32_0 = arith.constant 0 : i32
    return %arg0, %c0_i32 : i32, i32
  }
  func.func @transform_1(%arg0: i32) -> (i32, i32) {
    %c0_i32 = arith.constant 0 : i32
    %c0_i32_0 = arith.constant 0 : i32
    %c0_i32_1 = arith.constant 0 : i32
    return %c0_i32, %c0_i32_0 : i32, i32
  }
  func.func @transform_2(%arg0: i32) -> (i32, i32) {
    %c0_i32 = arith.constant 0 : i32
    %c0_i32_0 = arith.constant 0 : i32
    return %arg0, %c0_i32 : i32, i32
  }
}

</mosaic_0001>

<llo_original>
// kernel: tpu_custom_call.1
$region0: #{tpu_custom_call.1}
  #allocation0 [shape = 'u32[]', space=smem, size = 0x4, offset = 0x4, fixed_abs, tag = 'smem constant byte address 0x4 - core index']
  #allocation1 [shape = 'u32[144,128]{1,0:T(1,128)}', space=vmem, size = 0x12000, scoped, tag = 'internal scratch']
  %s0 = inlined_call_operand.vmem [shape: s32[16,1], index: 0, kind: input, shape index: {}]
  %s1 = inlined_call_operand.vmem [shape: f32[64,32], index: 1, kind: input, shape index: {}]
  %s2 = inlined_call_operand.hbm [shape: f32[16,32], index: 2, kind: output, shape index: {}]
  %s3 = sld [smem:[#allocation0]]
  $region18: #{tpu_custom_call.1} parent=0
    _
  %s5 = ssub.s32 1, %s3
  %s6 = scalar_select 0, %s5, %s3
  $region1: #{tpu_custom_call.1} parent=0
    #allocation2 [shape = 'u8[8192]{0}', space=vmem, size = 0x2000, scoped, tag = 'output window, operand 0, single buffered']
    #allocation3 [shape = 's32[1]{0}', space=sflag, size = 0x4, scoped, tag = 'scoped memory for tpu_custom_call.1']
    %7 = vsyncpa [#allocation3], 0
    // Predicated region
    $region2: #{tpu_custom_call.1} parent=1 // pred_check
      _
    $region3: #{tpu_custom_call.1} parent=1 // pred_check_branch
      %9 = sbr.rel (0) target = $region5
    $region4: #{tpu_custom_call.1} parent=1 // pred_region
      _
    $region5: #{tpu_custom_call.1} parent=1 // pred_fallthru
      _
    // Predicated region
    $region6: #{tpu_custom_call.1} parent=1 // pred_check
      _
    $region7: #{tpu_custom_call.1} parent=1 // pred_check_branch
      %11 = sbr.rel (0) target = $region9
    $region8: #{tpu_custom_call.1} parent=1 // pred_region
      _
    $region9: #{tpu_custom_call.1} parent=1 // pred_fallthru
      _
    %v12 = vld [vmem:[%s0] sm:$0xff]
    %v13 = vld [vmem:[%s0 + $0x8] sm:$0xff]
    %v14 = vlaneseq
    %v15 = vand.u32 %v14, 127
    %16 = vset.pattern.permute.xlu0 0
    %17 = vperm.xlu0 %16, %v12
    %v18 = vpop.permute.xlu0 %17
    %19 = vset.pattern.permute.xlu0 0
    %20 = vperm.xlu0 %19, %v13
    %v21 = vpop.permute.xlu0 %20
    %vm22 = vcmp.eq.s32.totalorder %v15, %v18
    %vm23 = vcmp.eq.s32.totalorder %v15, %v21
    %v24 = vsel %vm22, 1, 0
    %v25 = vsel %vm23, 1, 0
    %v26 = vcvt.s32.f32 %v24
    %v27 = vcvt.s32.f32 %v25
    %v28 = vld [vmem:[%s1] sm:$0xff]
    %v29 = vld [vmem:[%s1 + $0x8] sm:$0xff]
    %v30 = vld [vmem:[%s1 + $0x10] sm:$0xff]
    %v31 = vld [vmem:[%s1 + $0x18] sm:$0xff]
    %v32 = vld [vmem:[%s1 + $0x20] sm:$0xff]
    %v33 = vld [vmem:[%s1 + $0x28] sm:$0xff]
    %v34 = vld [vmem:[%s1 + $0x30] sm:$0xff]
    %v35 = vld [vmem:[%s1 + $0x38] sm:$0xff]
    %vm36 = vcmask 523264
    %v38 = vsel %vm36, %v26, 0
    %v41 = vsel %vm36, %v27, 0
    %43 = vmatprep.subr.mxu0 0.0
    %44 = vmatpush1.msra.mxu0 %v28
    %45 = vmatprep.subr.mxu0 0.0
    %46 = vmatpush1.msra.mxu0 %v29
    %47 = vmatprep.subr.mxu0 0.0
    %48 = vmatpush1.msra.mxu0 %v30
    %49 = vmatprep.subr.mxu0 0.0
    %50 = vmatpush1.msra.mxu0 %v31
    %51 = vmatprep.subr.mxu0 0.0
    %52 = vmatpush1.msra.mxu0 %v32
    %53 = vmatprep.subr.mxu0 0.0
    %54 = vmatpush1.msra.mxu0 %v33
    %55 = vmatprep.subr.mxu0 0.0
    %56 = vmatpush1.msra.mxu0 %v34
    %57 = vmatprep.subr.mxu0 0.0
    %58 = vmatpush1.msra.mxu0 %v35
    %59 = vmatprep.subr.mxu0 0.0
    %60 = vmatpush1.msra.mxu0 0.0
    %61 = vmatprep.subr.mxu0 0.0
    %62 = vmatpush1.msra.mxu0 0.0
    %63 = vmatprep.subr.mxu0 0.0
    %64 = vmatpush1.msra.mxu0 0.0
    %65 = vmatprep.subr.mxu0 0.0
    %66 = vmatpush1.msra.mxu0 0.0
    %67 = vmatprep.subr.mxu0 0.0
    %68 = vmatpush1.msra.mxu0 0.0
    %69 = vmatprep.subr.mxu0 0.0
    %70 = vmatpush1.msra.mxu0 0.0
    %71 = vmatprep.subr.mxu0 0.0
    %72 = vmatpush1.msra.mxu0 0.0
    %73 = vmatprep.subr.mxu0 0.0
    %74 = vmatpush1.msra.mxu0 0.0
    %75 = vmatprep.subr.mxu0 0.0
    %76 = vmatpush1.msra.mxu0 0.0
    %77 = vmatprep.subr.mxu0 0.0
    %78 = vmatpush1.msra.mxu0 0.0
    %79 = vmatprep.subr.mxu0 0.0
    %80 = vmatpush1.msra.mxu0 0.0
    %81 = vmatprep.subr.mxu0 0.0
    %82 = vmatpush1.msra.mxu0 0.0
    %83 = vmatprep.subr.mxu0 0.0
    %84 = vmatpush1.msra.mxu0 0.0
    %85 = vmatprep.subr.mxu0 0.0
    %86 = vmatpush1.msra.mxu0 0.0
    %87 = vmatprep.subr.mxu0 0.0
    %88 = vmatpush1.msra.mxu0 0.0
    %89 = vmatprep.subr.mxu0 0.0
    %90 = vmatpush1.msra.mxu0 0.0
    %91 = vmatprep.subr.mxu0 0.0
    %92 = vmatpush1.msra.mxu0 0.0
    %93 = vmatprep.subr.mxu0 0.0
    %94 = vmatpush1.msra.mxu0 0.0
    %95 = vmatprep.subr.mxu0 0.0
    %96 = vmatpush1.msra.mxu0 0.0
    %97 = vmatprep.subr.mxu0 0.0
    %98 = vmatpush1.msra.mxu0 0.0
    %99 = vmatprep.subr.mxu0 0.0
    %100 = vmatpush1.msra.mxu0 0.0
    %101 = vmatprep.subr.mxu0 0.0
    %102 = vmatpush1.msra.mxu0 0.0
    %103 = vmatprep.subr.mxu0 0.0
    %104 = vmatpush1.msra.mxu0 0.0
    %105 = vmatprep.subr.mxu0 0.0
    %106 = vmatpush1.msra.mxu0 0.0
    %107 = vmatprep.mubr.f32.mxu0 0.0
    %108 = vmatmul.mubr.f32.gmra.mrb[0].mxu0 %v38
    %v109 = vpop.f32.mrb[0].mxu0
    %v110 = vadd.f32 0.0, %v109
    %v111 = vpop.f32.mrb[0].mxu0
    %112 = vmatprep.mubr.f32.mxu0 0.0
    %113 = vmatmul.mubr.f32.gmra.mrb[0].mxu0 %v41
    %v114 = vpop.f32.mrb[0].mxu0
    %v115 = vadd.f32 0.0, %v114
    %v116 = vpop.f32.mrb[0].mxu0
    %117 = vdwg.mxu0
    %vm118 = vcmask 261120
    %119 = vst.msk [vmem:[#allocation2] sm:$0xff] %vm118, %v110
    %120 = vst.msk [vmem:[#allocation2 + $0x8] sm:$0xff] %vm118, %v115
    // Predicated region
    $region10: #{tpu_custom_call.1} parent=1 // pred_check
      _
    $region11: #{tpu_custom_call.1} parent=1 // pred_check_branch
      %122 = sbr.rel (0) target = $region13
    $region12: #{tpu_custom_call.1} parent=1 // pred_region
      %s124 = ssub.s32 256, 256
      %125 = vsyncadd [#allocation3], %s124
      %s126 = sshll.u32 [#allocation2], 4
      %s127 = int_to_ptr.vmem [resolvable:$true] %s126
      %132 = dma.vmem_to_hbm [thread:$0]  %s127, 256, %s2, [#allocation3], 128, 128, 8
    $region13: #{tpu_custom_call.1} parent=1 // pred_fallthru
      _
    // Predicated region
    $region14: #{tpu_custom_call.1} parent=1 // pred_check
      _
    $region15: #{tpu_custom_call.1} parent=1 // pred_check_branch
      %134 = sbr.rel (0) target = $region17
    $region16: #{tpu_custom_call.1} parent=1 // pred_region
      %135 = dma.done [#allocation3], 256
    $region17: #{tpu_custom_call.1} parent=1 // pred_fallthru
      _
    %136 = vsyncpa [#allocation3], 1

</llo_original>
